<compile_context>
chip_gen: v6e
topology: v6e:2x2x1
jax: 0.10.0
libtpu: 0.0.40
codegen_flags: <defaults>
</compile_context>

<pallas_src>
import functools

import jax
import jax.numpy as jnp
from jax.experimental import pallas as pl
from jax.experimental.pallas import tpu as pltpu

_LANES = 128
# Per-block byte cap. With Pallas double-buffering, in + out = 4 blocks
# = 16 MiB of VMEM, under the 32 MiB scoped default on v5e/v6e/v7x.
_MAX_BLOCK_BYTES = 4 * 1024 * 1024


def _swish_kernel(x_ref, o_ref, *, beta):
    # y = x * sigmoid(beta*x) = 0.5*x + 0.5*x * tanh(0.5*beta*x)
    # Elementwise, HBM-bound: one tanh on the EUP, muls/adds on the VALU.
    x = x_ref[...].astype(jnp.float32)
    half_x = x * jnp.float32(0.5)
    z = half_x if beta == 1.0 else x * jnp.float32(0.5 * beta)
    t = jnp.tanh(z)  # single EUP transcendental per element
    o_ref[...] = (half_x + half_x * t).astype(o_ref.dtype)


def _sublane_multiple(itemsize: int) -> int:
    # Packed-sublane granularity: 8 for f32, 16 for bf16, 32 for int8/fp8.
    return max(8, 32 // itemsize)


def _pick_block_rows(rows: int, itemsize: int) -> int:
    """Dtype-aware block height: big tiles, but >= 2 grid steps when non-trivial."""
    sub = _sublane_multiple(itemsize)
    max_rows = _MAX_BLOCK_BYTES // (_LANES * itemsize)
    if rows <= 2 * sub:
        # Tiny input: one full-extent block (always a legal block shape).
        return rows
    # Split into ~2 so the "parallel" axis can shard across v7x's 2 TCs,
    # but never below cdiv(rows, 2) so single-TC v5e/v6e keep large tiles.
    target = pl.cdiv(rows, 2)
    target = ((target + sub - 1) // sub) * sub
    return min(max_rows, target)


def _cost(n: int, itemsize: int) -> pl.CostEstimate:
    return pl.CostEstimate(
        flops=4 * n, transcendentals=n, bytes_accessed=2 * n * itemsize
    )


def _swish_2d(x2d, beta, donate):
    rows, _ = x2d.shape
    itemsize = x2d.dtype.itemsize
    block_rows = _pick_block_rows(rows, itemsize)
    grid = (pl.cdiv(rows, block_rows),)  # ragged last row-block handled by Pallas
    kernel = functools.partial(_swish_kernel, beta=beta)
    return pl.pallas_call(
        kernel,
        out_shape=jax.ShapeDtypeStruct((rows, _LANES), x2d.dtype),
        grid_spec=pltpu.PrefetchScalarGridSpec(
            num_scalar_prefetch=0,
            grid=grid,
            in_specs=[pl.BlockSpec((block_rows, _LANES), lambda i: (i, 0))],
            out_specs=pl.BlockSpec((block_rows, _LANES), lambda i: (i, 0)),
        ),
        compiler_params=pltpu.CompilerParams(dimension_semantics=("parallel",)),
        cost_estimate=_cost(rows * _LANES, itemsize),
        input_output_aliases={0: 0} if donate else {},
    )(x2d)


def _swish_1d(x1d, beta, donate):
    # Ragged path (x.size % 128 != 0): run directly on the un-padded flat
    # array — no concatenate/pad of the input, no slice of the output.
    n = x1d.shape[0]
    itemsize = x1d.dtype.itemsize
    max_elems = _MAX_BLOCK_BYTES // itemsize  # multiple of 1024 for all itemsizes
    block = n if n <= max_elems else max_elems
    grid = (pl.cdiv(n, block),)  # masked ragged final block for huge ragged inputs
    kernel = functools.partial(_swish_kernel, beta=beta)
    return pl.pallas_call(
        kernel,
        out_shape=jax.ShapeDtypeStruct((n,), x1d.dtype),
        grid_spec=pltpu.PrefetchScalarGridSpec(
            num_scalar_prefetch=0,
            grid=grid,
            in_specs=[pl.BlockSpec((block,), lambda i: (i,))],
            out_specs=pl.BlockSpec((block,), lambda i: (i,)),
        ),
        compiler_params=pltpu.CompilerParams(dimension_semantics=("parallel",)),
        cost_estimate=_cost(n, itemsize),
        input_output_aliases={0: 0} if donate else {},
    )(x1d)


def swish(x, beta=1.0, *, donate=False):
    """Swish / SiLU: x * sigmoid(beta * x). Accepts any shape (e.g. NCHW).

    beta must be a static Python number (it is folded into the kernel).
    Set donate=True only if x's buffer is donatable (e.g. donated under jit);
    the output then aliases the input buffer.
    """
    beta = float(beta)  # static; a traced beta is not supported
    orig_shape = x.shape
    n = x.size
    if n == 0:
        return x

    x_flat = jnp.ravel(x)  # free metadata reshape for contiguous input
    if n % _LANES == 0:
        out = _swish_2d(x_flat.reshape(n // _LANES, _LANES), beta, donate)
    else:
        out = _swish_1d(x_flat, beta, donate)
    return out.reshape(orig_shape)


if __name__ == "__main__":
    key = jax.random.PRNGKey(0)

    # NCHW input, as a PyTorch conv-style activation would see (2-D fast path).
    x = jax.random.normal(key, (2, 4, 16, 16), dtype=jnp.float32)
    y = jax.block_until_ready(swish(x, beta=1.0))
    y_ref = x * jax.nn.sigmoid(x)
    assert y.shape == x.shape and y.dtype == x.dtype
    assert jnp.allclose(y, y_ref, atol=1e-5, rtol=1e-5)

    # 2-D path with a ragged final row-block (rows=20, block=16) + non-unit beta.
    x1 = jax.random.normal(jax.random.PRNGKey(1), (4, 5, 128), dtype=jnp.float32)
    y1 = jax.block_until_ready(swish(x1, beta=0.75))
    assert jnp.allclose(y1, x1 * jax.nn.sigmoid(0.75 * x1), atol=1e-5, rtol=1e-5)

    # 1-D ragged path (size 105, not a multiple of 128), non-unit beta.
    x2 = jax.random.normal(jax.random.PRNGKey(2), (3, 5, 7), dtype=jnp.float32)
    y2 = jax.block_until_ready(swish(x2, beta=1.7))
    assert jnp.allclose(y2, x2 * jax.nn.sigmoid(1.7 * x2), atol=1e-5, rtol=1e-5)

    # bf16 input: dtype-aware tiling, f32 internal compute, bf16 store.
    xb = jax.random.normal(jax.random.PRNGKey(3), (2, 4, 16, 16), dtype=jnp.bfloat16)
    yb = jax.block_until_ready(swish(xb))
    xb_f32 = xb.astype(jnp.float32)
    yb_ref = (xb_f32 * jax.nn.sigmoid(xb_f32)).astype(jnp.bfloat16)
    assert yb.dtype == jnp.bfloat16 and yb.shape == xb.shape
    assert jnp.allclose(
        yb.astype(jnp.float32), yb_ref.astype(jnp.float32), atol=2e-2, rtol=2e-2
    )

    print("KERNEL_OK")
</pallas_src>

<mosaic_0001>
module attributes {stable_mosaic.version = 11 : i64} {
  func.func @_swish_kernel(%arg0: i32, %arg1: memref<16x128xf32, #tpu.memory_space<vmem>>, %arg2: memref<16x128xf32, #tpu.memory_space<vmem>>) attributes {dimension_semantics = [#tpu.dimension_semantics<parallel>], iteration_bounds = array<i64: 1>, scalar_prefetch = 0 : i64, scratch_operands = 0 : i64, tpu.core_type = #tpu.core_type<tc>, window_params = [{transform_indices = @transform_0, window_bounds = array<i64: 16, 128>}, {transform_indices = @transform_1, window_bounds = array<i64: 16, 128>}]} {
    %c0 = arith.constant 0 : index
    %c0_0 = arith.constant 0 : index
    %0 = vector.load %arg1[%c0, %c0_0] : memref<16x128xf32, #tpu.memory_space<vmem>>, vector<16x128xf32>
    %cst = arith.constant 5.000000e-01 : f32
    %1 = vector.broadcast %cst : f32 to vector<16x128xf32>
    %2 = arith.mulf %0, %1 : vector<16x128xf32>
    %3 = math.tanh %2 : vector<16x128xf32>
    %4 = arith.mulf %2, %3 : vector<16x128xf32>
    %5 = arith.addf %2, %4 : vector<16x128xf32>
    %c0_1 = arith.constant 0 : index
    %c0_2 = arith.constant 0 : index
    %6 = vector.load %arg2[%c0_1, %c0_2] : memref<16x128xf32, #tpu.memory_space<vmem>>, vector<16x128xf32>
    tpu.vector_store %arg2[%c0_1, %c0_2], %5 {strides = array<i32>} : memref<16x128xf32, #tpu.memory_space<vmem>>, vector<16x128xf32>,
    return
  }
  func.func @transform_0(%arg0: i32) -> (i32, i32) {
    %c0_i32 = arith.constant 0 : i32
    %c0_i32_0 = arith.constant 0 : i32
    return %arg0, %c0_i32 : i32, i32
  }
  func.func @transform_1(%arg0: i32) -> (i32, i32) {
    %c0_i32 = arith.constant 0 : i32
    %c0_i32_0 = arith.constant 0 : i32
    return %arg0, %c0_i32 : i32, i32
  }
}

</mosaic_0001>

<llo_original>
// kernel: tpu_custom_call.1
$region0: #{tpu_custom_call.1}
  #allocation0 [shape = 'u32[]', space=smem, size = 0x4, offset = 0x4, fixed_abs, tag = 'smem constant byte address 0x4 - core index']
  #allocation1 [shape = 'u32[144,128]{1,0:T(1,128)}', space=vmem, size = 0x12000, scoped, tag = 'internal scratch']
  %s0 = inlined_call_operand.hbm [shape: f32[16,128], index: 0, kind: input, shape index: {}]
  %s1 = inlined_call_operand.hbm [shape: f32[16,128], index: 1, kind: output, shape index: {}]
  %s2 = sld [smem:[#allocation0]]
  $region18: #{tpu_custom_call.1} parent=0
    _
  %s4 = ssub.s32 1, %s2
  %s5 = scalar_select 0, %s4, %s2
  $region1: #{tpu_custom_call.1} parent=0
    #allocation2 [shape = 'u8[8192]{0}', space=vmem, size = 0x2000, scoped, tag = 'input window, operand 0, single buffered']
    #allocation3 [shape = 's32[1]{0}', space=sflag, size = 0x4, scoped, tag = 'scoped memory for tpu_custom_call.1']
    #allocation4 [shape = 's32[1]{0}', space=sflag, size = 0x4, scoped, tag = 'scoped memory for tpu_custom_call.1']
    #allocation5 [shape = 'u8[8192]{0}', space=vmem, size = 0x2000, scoped, tag = 'output window, operand 0, single buffered']
    %6 = vsyncpa [#allocation3], 0
    %7 = vsyncpa [#allocation4], 0
    // Predicated region
    $region2: #{tpu_custom_call.1} parent=1 // pred_check
      _
    $region3: #{tpu_custom_call.1} parent=1 // pred_check_branch
      %9 = sbr.rel (0) target = $region5
    $region4: #{tpu_custom_call.1} parent=1 // pred_region
      %s11 = ssub.s32 256, 256
      %12 = vsyncadd [#allocation3], %s11
      %s13 = sshll.u32 [#allocation2], 4
      %s14 = int_to_ptr.vmem [resolvable:$true] %s13
      %19 = dma.hbm_to_vmem [thread:$0]  %s0, 256, %s14, [#allocation3], 128, 128, 8
    $region5: #{tpu_custom_call.1} parent=1 // pred_fallthru
      _
    // Predicated region
    $region6: #{tpu_custom_call.1} parent=1 // pred_check
      _
    $region7: #{tpu_custom_call.1} parent=1 // pred_check_branch
      %21 = sbr.rel (0) target = $region9
    $region8: #{tpu_custom_call.1} parent=1 // pred_region
      %22 = dma.done [#allocation3], 256
    $region9: #{tpu_custom_call.1} parent=1 // pred_fallthru
      _
    %v23 = vld [vmem:[#allocation2] sm:$0xff]
    %v24 = vld [vmem:[#allocation2 + $0x8] sm:$0xff]
    %v25 = vmul.f32 %v23, 0.5
    %v26 = vmul.f32 %v24, 0.5
    %v27 = vtanh.pop %v25
    %v28 = vtanh.pop %v26
    %v29 = vmul.f32 %v25, %v27
    %v30 = vmul.f32 %v26, %v28
    %v31 = vadd.f32 %v25, %v29
    %v32 = vadd.f32 %v26, %v30
    %33 = vst [vmem:[#allocation5] sm:$0xff] %v31
    %34 = vst [vmem:[#allocation5 + $0x8] sm:$0xff] %v32
    // Predicated region
    $region10: #{tpu_custom_call.1} parent=1 // pred_check
      _
    $region11: #{tpu_custom_call.1} parent=1 // pred_check_branch
      %36 = sbr.rel (0) target = $region13
    $region12: #{tpu_custom_call.1} parent=1 // pred_region
      %s38 = ssub.s32 256, 256
      %39 = vsyncadd [#allocation4], %s38
      %s40 = sshll.u32 [#allocation5], 4
      %s41 = int_to_ptr.vmem [resolvable:$true] %s40
      %46 = dma.vmem_to_hbm [thread:$0]  %s41, 256, %s1, [#allocation4], 128, 128, 8
    $region13: #{tpu_custom_call.1} parent=1 // pred_fallthru
      _
    // Predicated region
    $region14: #{tpu_custom_call.1} parent=1 // pred_check
      _
    $region15: #{tpu_custom_call.1} parent=1 // pred_check_branch
      %48 = sbr.rel (0) target = $region17
    $region16: #{tpu_custom_call.1} parent=1 // pred_region
      %49 = dma.done [#allocation4], 256
    $region17: #{tpu_custom_call.1} parent=1 // pred_fallthru
      _
    %50 = vsyncpa [#allocation3], 1
    %51 = vsyncpa [#allocation4], 1

</llo_original>
